<compile_context>
chip_gen: v5e
topology: v5e:2x2
jax: 0.10.0
libtpu: 0.0.40
codegen_flags: <defaults>
</compile_context>

<pallas_src>
import math

import jax
import jax.numpy as jnp
from jax.experimental import pallas as pl
from jax.experimental.pallas import tpu as pltpu


def _add_pe_kernel(x_ref, pe_ref, o_ref):
    # x_ref, o_ref: (tile_s, B, E); pe_ref: (tile_s, E).
    # Broadcast the PE rows across the batch axis in-register; the cast and
    # broadcast ride VPU/XLU slots that are idle under the streaming DMAs.
    pe = pe_ref[...].astype(o_ref.dtype)[:, None, :]
    o_ref[...] = x_ref[...] + pe


def make_pos_embedding(emb_size: int, maxlen: int = 750, scale_factor: float = 1.0):
    """Sinusoidal positional-encoding buffer, shape (maxlen, 1, emb_size), f32."""
    den = jnp.exp(
        -jnp.arange(0, emb_size, 2, dtype=jnp.float32)
        * math.log(10000.0) / emb_size * scale_factor
    )  # (ceil(E/2),)
    pos = jnp.arange(0, maxlen, dtype=jnp.float32).reshape(maxlen, 1)
    angles = pos * den  # (maxlen, ceil(E/2))
    pe = jnp.zeros((maxlen, emb_size), dtype=jnp.float32)
    pe = pe.at[:, 0::2].set(jnp.sin(angles))
    pe = pe.at[:, 1::2].set(jnp.cos(angles)[:, : emb_size // 2])
    return pe[:, None, :]  # (maxlen, 1, emb_size)


def _vmem_capacity_bytes() -> int:
    try:
        return int(pltpu.get_tpu_info().vmem_capacity_bytes)
    except Exception:
        return 64 * 1024 * 1024  # conservative fallback (v7x per-core VMEM)


def _round_up(x: int, m: int) -> int:
    return -(-x // m) * m


def _choose_tile_s(S: int, x_row_bytes: int, pe_row_bytes: int, vmem_budget: int) -> int:
    """Sequence rows per grid step (always a multiple of 8)."""
    # Per tile row: double-buffered x block + out block + PE block.
    per_row = 2 * (2 * x_row_bytes + pe_row_bytes)
    max_rows = max((vmem_budget // per_row) // 8 * 8, 8)
    # Prefer >= 4 grid steps so the pipeline overlaps DMA/compute/writeback and
    # v7x's second TensorCore gets work; never below one 8-row sublane tile.
    target = max(_round_up(-(-S // 4), 8), 8)
    return min(max_rows, target, 2048)


def positional_encoding_forward(token_embedding: jax.Array, pe_table: jax.Array):
    """token_embedding: (S, B, E); pe_table: (maxlen, E) float32. Returns (S, B, E).

    Note: output dtype follows token_embedding (PyTorch would promote bf16+f32
    to f32; here the tiny PE block is cast in-kernel instead).
    """
    S, B, E = token_embedding.shape
    maxlen, e_pe = pe_table.shape
    assert e_pe == E, "pos-embedding width mismatch"
    assert S <= maxlen, "sequence longer than maxlen"

    dtype = token_embedding.dtype
    vmem_cap = _vmem_capacity_bytes()
    tile_s = _choose_tile_s(
        S, B * E * dtype.itemsize, E * pe_table.dtype.itemsize, vmem_cap // 4
    )
    grid = (pl.cdiv(S, tile_s),)

    return pl.pallas_call(
        _add_pe_kernel,
        out_shape=jax.ShapeDtypeStruct((S, B, E), dtype),
        grid=grid,
        in_specs=[
            pl.BlockSpec((tile_s, B, E), lambda i: (i, 0, 0)),
            # PE blocks are indexed straight out of the (maxlen, E) table; only
            # the blocks covering rows [0, S) are ever fetched -> the [:S]
            # slice never materializes in the wrapper.
            pl.BlockSpec((tile_s, E), lambda i: (i, 0)),
        ],
        out_specs=pl.BlockSpec((tile_s, B, E), lambda i: (i, 0, 0)),
        compiler_params=pltpu.CompilerParams(
            dimension_semantics=("parallel",),
            vmem_limit_bytes=vmem_cap // 2,
        ),
    )(token_embedding, pe_table)


if __name__ == "__main__":
    emb_size = 32
    maxlen = 750
    seq_len = 8
    batch = 2

    key = jax.random.PRNGKey(0)
    x = jax.random.normal(key, (seq_len, batch, emb_size), dtype=jnp.float32)

    # Module "init": build the (maxlen, 1, E) buffer once; hoist the squeeze to
    # (maxlen, E) out of the per-call path (review feedback).
    pos_embedding = make_pos_embedding(emb_size, maxlen=maxlen, scale_factor=1.0)
    pe_table = pos_embedding[:, 0, :]  # (maxlen, E), f32, computed once at init

    out = positional_encoding_forward(x, pe_table)
    out = jax.block_until_ready(out)

    # Reference check (pure JAX, eval-mode dropout == identity)
    ref = x + pos_embedding[:seq_len]
    assert out.shape == (seq_len, batch, emb_size)
    assert jnp.allclose(out, ref, atol=1e-6), "mismatch vs reference (small)"

    # Second check exercising the multi-step grid path (tile_s=16 -> 4 steps)
    # with a lane-dense E (multiple of 128).
    S2, B2, E2 = 64, 8, 128
    pos_embedding2 = make_pos_embedding(E2, maxlen=maxlen)
    pe_table2 = pos_embedding2[:, 0, :]
    x2 = jax.random.normal(jax.random.PRNGKey(1), (S2, B2, E2), dtype=jnp.float32)
    out2 = jax.block_until_ready(positional_encoding_forward(x2, pe_table2))
    ref2 = x2 + pos_embedding2[:S2]
    assert jnp.allclose(out2, ref2, atol=1e-6), "mismatch vs reference (grid)"

    print("KERNEL_OK")
</pallas_src>

<mosaic_0001>
module attributes {stable_mosaic.version = 11 : i64} {
  func.func @_add_pe_kernel(%arg0: i32, %arg1: memref<8x2x32xf32, #tpu.memory_space<vmem>>, %arg2: memref<8x32xf32, #tpu.memory_space<vmem>>, %arg3: memref<8x2x32xf32, #tpu.memory_space<vmem>>) attributes {dimension_semantics = [#tpu.dimension_semantics<parallel>], iteration_bounds = array<i64: 1>, scalar_prefetch = 0 : i64, scratch_operands = 0 : i64, tpu.core_type = #tpu.core_type<tc>, window_params = [{transform_indices = @transform_0, window_bounds = array<i64: 8, 2, 32>}, {transform_indices = @transform_1, window_bounds = array<i64: 8, 32>}, {transform_indices = @transform_2, window_bounds = array<i64: 8, 2, 32>}]} {
    %c0 = arith.constant 0 : index
    %c0_0 = arith.constant 0 : index
    %0 = vector.load %arg2[%c0, %c0_0] : memref<8x32xf32, #tpu.memory_space<vmem>>, vector<8x32xf32>
    %1 = vector.shape_cast %0 : vector<8x32xf32> to vector<8x1x32xf32>
    %c0_1 = arith.constant 0 : index
    %c0_2 = arith.constant 0 : index
    %c0_3 = arith.constant 0 : index
    %2 = vector.load %arg1[%c0_1, %c0_2, %c0_3] : memref<8x2x32xf32, #tpu.memory_space<vmem>>, vector<8x2x32xf32>
    %3 = vector.broadcast %1 : vector<8x1x32xf32> to vector<8x2x32xf32>
    %4 = arith.addf %2, %3 : vector<8x2x32xf32>
    %c0_4 = arith.constant 0 : index
    %c0_5 = arith.constant 0 : index
    %c0_6 = arith.constant 0 : index
    %5 = vector.load %arg3[%c0_4, %c0_5, %c0_6] : memref<8x2x32xf32, #tpu.memory_space<vmem>>, vector<8x2x32xf32>
    tpu.vector_store %arg3[%c0_4, %c0_5, %c0_6], %4 {strides = array<i32>} : memref<8x2x32xf32, #tpu.memory_space<vmem>>, vector<8x2x32xf32>,
    return
  }
  func.func @transform_0(%arg0: i32) -> (i32, i32, i32) {
    %c0_i32 = arith.constant 0 : i32
    %c0_i32_0 = arith.constant 0 : i32
    %c0_i32_1 = arith.constant 0 : i32
    return %arg0, %c0_i32, %c0_i32_0 : i32, i32, i32
  }
  func.func @transform_1(%arg0: i32) -> (i32, i32) {
    %c0_i32 = arith.constant 0 : i32
    %c0_i32_0 = arith.constant 0 : i32
    return %arg0, %c0_i32 : i32, i32
  }
  func.func @transform_2(%arg0: i32) -> (i32, i32, i32) {
    %c0_i32 = arith.constant 0 : i32
    %c0_i32_0 = arith.constant 0 : i32
    %c0_i32_1 = arith.constant 0 : i32
    return %arg0, %c0_i32, %c0_i32_0 : i32, i32, i32
  }
}

</mosaic_0001>

<llo_original>
// kernel: tpu_custom_call.1
$region0: #{tpu_custom_call.1}
  #allocation0 [shape = 'u32[]', space=smem, size = 0x4, offset = 0x4, fixed_abs, tag = 'smem constant byte address 0x4 - core index']
  #allocation1 [shape = 'u32[72,128]{1,0:T(1,128)}', space=vmem, size = 0x9000, scoped, tag = 'internal scratch']
  %s0 = inlined_call_operand.vmem [shape: f32[8,2,32], index: 0, kind: input, shape index: {}]
  %s1 = inlined_call_operand.vmem [shape: f32[750,32], index: 1, kind: input, shape index: {}]
  %s2 = inlined_call_operand.hbm [shape: f32[8,2,32], index: 2, kind: output, shape index: {}]
  %s3 = sld [smem:[#allocation0]]
  $region18: #{tpu_custom_call.1} parent=0
    _
  %s5 = ssub.s32 1, %s3
  %s6 = scalar_select 0, %s5, %s3
  $region1: #{tpu_custom_call.1} parent=0
    #allocation2 [shape = 'u8[8192]{0}', space=vmem, size = 0x2000, scoped, tag = 'output window, operand 0, single buffered']
    #allocation3 [shape = 's32[1]{0}', space=sflag, size = 0x4, scoped, tag = 'scoped memory for tpu_custom_call.1']
    %7 = vsyncpa [#allocation3], 0
    // Predicated region
    $region2: #{tpu_custom_call.1} parent=1 // pred_check
      _
    $region3: #{tpu_custom_call.1} parent=1 // pred_check_branch
      %9 = sbr.rel (0) target = $region5
    $region4: #{tpu_custom_call.1} parent=1 // pred_region
      _
    $region5: #{tpu_custom_call.1} parent=1 // pred_fallthru
      _
    // Predicated region
    $region6: #{tpu_custom_call.1} parent=1 // pred_check
      _
    $region7: #{tpu_custom_call.1} parent=1 // pred_check_branch
      %11 = sbr.rel (0) target = $region9
    $region8: #{tpu_custom_call.1} parent=1 // pred_region
      _
    $region9: #{tpu_custom_call.1} parent=1 // pred_fallthru
      _
    %v12 = vld [vmem:[%s1] sm:$0xff]
    %v14 = vrot.slane %v12, 1
    %v15 = vrot.slane %v12, 2
    %v16 = vrot.slane %v12, 3
    %v17 = vrot.slane %v12, 4
    %v18 = vrot.slane %v12, 5
    %v19 = vrot.slane %v12, 6
    %v20 = vrot.slane %v12, 7
    %v21 = vld [vmem:[%s0] sm:$0x3]
    %v22 = vld [vmem:[%s0 + $0x2] sm:$0x3]
    %v23 = vld [vmem:[%s0 + $0x4] sm:$0x3]
    %v24 = vld [vmem:[%s0 + $0x6] sm:$0x3]
    %v25 = vld [vmem:[%s0 + $0x8] sm:$0x3]
    %v26 = vld [vmem:[%s0 + $0xa] sm:$0x3]
    %v27 = vld [vmem:[%s0 + $0xc] sm:$0x3]
    %v28 = vld [vmem:[%s0 + $0xe] sm:$0x3]
    %v29 = vperm.slane %v12, 0
    %v30 = vperm.slane %v14, 0
    %v31 = vperm.slane %v15, 0
    %v32 = vperm.slane %v16, 0
    %v33 = vperm.slane %v17, 0
    %v34 = vperm.slane %v18, 0
    %v35 = vperm.slane %v19, 0
    %v36 = vperm.slane %v20, 0
    %v45 = vadd.f32 %v21, %v29
    %v46 = vadd.f32 %v22, %v30
    %v47 = vadd.f32 %v23, %v31
    %v48 = vadd.f32 %v24, %v32
    %v49 = vadd.f32 %v25, %v33
    %v50 = vadd.f32 %v26, %v34
    %v51 = vadd.f32 %v27, %v35
    %v52 = vadd.f32 %v28, %v36
    %vm53 = vcmask 254976
    %54 = vst.msk [vmem:[#allocation2] sm:$0x3] %vm53, %v45
    %55 = vst.msk [vmem:[#allocation2 + $0x2] sm:$0x3] %vm53, %v46
    %56 = vst.msk [vmem:[#allocation2 + $0x4] sm:$0x3] %vm53, %v47
    %57 = vst.msk [vmem:[#allocation2 + $0x6] sm:$0x3] %vm53, %v48
    %58 = vst.msk [vmem:[#allocation2 + $0x8] sm:$0x3] %vm53, %v49
    %59 = vst.msk [vmem:[#allocation2 + $0xa] sm:$0x3] %vm53, %v50
    %60 = vst.msk [vmem:[#allocation2 + $0xc] sm:$0x3] %vm53, %v51
    %61 = vst.msk [vmem:[#allocation2 + $0xe] sm:$0x3] %vm53, %v52
    // Predicated region
    $region10: #{tpu_custom_call.1} parent=1 // pred_check
      _
    $region11: #{tpu_custom_call.1} parent=1 // pred_check_branch
      %63 = sbr.rel (0) target = $region13
    $region12: #{tpu_custom_call.1} parent=1 // pred_region
      %65 = vsyncadd [#allocation3], 0
      %s66 = sshll.u32 [#allocation2], 4
      %s67 = int_to_ptr.vmem [resolvable:$true] %s66
      %s68 = sshll.u32 %s2, 4
      %s69 = int_to_ptr.hbm [resolvable:$true] %s68
      %74 = dma.vmem_to_hbm [thread:$0]  %s67, 256, %s69, [#allocation3], 32, 32, 2
    $region13: #{tpu_custom_call.1} parent=1 // pred_fallthru
      _
    // Predicated region
    $region14: #{tpu_custom_call.1} parent=1 // pred_check
      _
    $region15: #{tpu_custom_call.1} parent=1 // pred_check_branch
      %76 = sbr.rel (0) target = $region17
    $region16: #{tpu_custom_call.1} parent=1 // pred_region
      %78 = dma.done [#allocation3], 256
    $region17: #{tpu_custom_call.1} parent=1 // pred_fallthru
      _
    %79 = vsyncpa [#allocation3], 1

</llo_original>
